<compile_context>
chip_gen: v6e
topology: v6e:2x2x1
jax: 0.10.0
libtpu: 0.0.40
codegen_flags: <defaults>
</compile_context>

<pallas_src>
import functools

import jax
import jax.numpy as jnp
from jax.experimental import pallas as pl
from jax.experimental.pallas import tpu as pltpu


def _round_up(x, m):
    return (x + m - 1) // m * m


def _cdiv(a, b):
    return -(-a // b)


def _pad2d(a, rows, cols):
    r, c = a.shape
    if r == rows and c == cols:
        return a
    return jnp.pad(a, ((0, rows - r), (0, cols - c)))


def _fused_mlp_kernel(*refs, n_layers, relu_flags, scalar_head):
    """refs = (x, w_0..w_{n-1}, b_0..b_{n-1}, out). Whole MLP in one body."""
    x_ref = refs[0]
    w_refs = refs[1:1 + n_layers]
    b_refs = refs[1 + n_layers:1 + 2 * n_layers]
    o_ref = refs[1 + 2 * n_layers]

    # f32 -> bf16 cast on the VPU; the wrapper no longer pads/casts x in HBM.
    h = x_ref[...].astype(jnp.bfloat16)
    y = None
    for i in range(n_layers):
        last = i == n_layers - 1
        if last and scalar_head:
            # size-1 head: VPU multiply + XLU cross-lane reduce instead of an
            # MXU matmul against a 128x zero-padded weight column.
            prod = h.astype(jnp.float32) * w_refs[i][...].astype(jnp.float32)
            y = jnp.sum(prod, axis=-1, keepdims=True)          # (blk, 1) f32
            # Lane-dense store: broadcast across the 128-wide padded output
            # (wrapper slices column 0). Bias row is pre-broadcast host-side.
            y = jnp.broadcast_to(y, o_ref.shape) + b_refs[i][...]
        else:
            # MXU: bf16 x bf16 -> f32 accumulate.
            y = jnp.dot(h, w_refs[i][...], preferred_element_type=jnp.float32)
            y = y + b_refs[i][...]                              # f32 epilogue
            if relu_flags[i]:
                y = jnp.maximum(y, 0.0)
        if not last:
            h = y.astype(jnp.bfloat16)                          # next operand
    o_ref[...] = y.astype(o_ref.dtype)


def _plan_batch_tiles(batch, block_batch):
    """Return (n_tiles, block_rows). Minimal padding, >=2 even tiles when
    gridded so both v7x TensorCores get balanced work."""
    if batch < 256:
        # Small problem: single invocation, whole arrays resident in VMEM.
        return 1, _round_up(batch, 8)
    n_tiles = max(2, _cdiv(batch, block_batch))
    if n_tiles % 2:
        n_tiles += 1
    blk = _round_up(_cdiv(batch, n_tiles), 8)
    return n_tiles, blk


def mlp_pallas_forward(x, params, output_sizes, *, block_batch=512):
    """Fused MLP forward.

    x: [batch, input_size] float32.
    params: list of (w [in, out], b [out]) float32 (w is transpose of
            PyTorch's [out, in] layout so the kernel computes x @ W + b).
    """
    n = len(params)
    assert n == len(output_sizes) and n >= 1
    relu_flags = tuple(int(s) != 1 for s in output_sizes)  # act iff size != 1
    scalar_head = int(output_sizes[-1]) == 1

    batch, in_f = x.shape
    dims = [in_f] + [int(w.shape[1]) for (w, _) in params]
    out_pads = [_round_up(d, 128) for d in dims[1:]]        # lane-dense widths
    in_dims = [in_f] + out_pads[:-1]                        # per-layer K dims

    # Weight/bias prep (weights bf16: half DMA bytes, 2x MXU rate; bias f32).
    # Zero padding is numerically inert (padded lanes stay 0 through bias+ReLU).
    ws, bs = [], []
    for i, (w, b) in enumerate(params):
        if scalar_head and i == n - 1:
            # (K, 1) weight as a lane-dense (1, K) row for the VPU/XLU path.
            ws.append(_pad2d(w.T, 1, in_dims[i]).astype(jnp.bfloat16))
            bs.append(jnp.full((1, out_pads[i]), b[0], jnp.float32))
        else:
            ws.append(_pad2d(w, in_dims[i], out_pads[i]).astype(jnp.bfloat16))
            bs.append(_pad2d(b.astype(jnp.float32).reshape(1, -1),
                             1, out_pads[i]))

    # Batch tiling plan: pad only to the sublane multiple, not a full block.
    n_tiles, blk = _plan_batch_tiles(batch, block_batch)
    pbatch = n_tiles * blk
    xp = _pad2d(x, pbatch, in_f)     # no feature-dim pad, no host cast

    # VMEM footprint: weights/biases single-buffered, x/out tiles (double-
    # buffered on the grid path), plus f32 temporaries. Cap at 48 MiB (v7x).
    w_bytes = sum(int(w.size) * 2 for w in ws)
    b_bytes = sum(int(b.size) * 4 for b in bs)
    x_tile = blk * in_f * 4
    o_tile = blk * out_pads[-1] * 4
    tmp = blk * max([in_f] + out_pads) * 4 * 3
    if n_tiles == 1:
        footprint = w_bytes + b_bytes + x_tile + o_tile + tmp
    else:
        footprint = w_bytes + b_bytes + 2 * (x_tile + o_tile) + tmp
    vmem_limit = int(min(48 * 1024 * 1024,
                         max(16 * 1024 * 1024, footprint * 1.3)))

    flops = 2 * pbatch * sum(in_dims[i] * out_pads[i] for i in range(n))
    bytes_accessed = (pbatch * in_f * 4 + w_bytes + b_bytes
                      + pbatch * out_pads[-1] * 4)
    cost = pl.CostEstimate(flops=int(flops), transcendentals=0,
                           bytes_accessed=int(bytes_accessed))

    kernel = functools.partial(_fused_mlp_kernel, n_layers=n,
                               relu_flags=relu_flags, scalar_head=scalar_head)
    out_shape = jax.ShapeDtypeStruct((pbatch, out_pads[-1]), jnp.float32)

    if n_tiles == 1:
        # Whole problem resident in VMEM: no grid, no pipeline buffering.
        vmem_spec = pl.BlockSpec(memory_space=pltpu.MemorySpace.VMEM)
        out = pl.pallas_call(
            kernel,
            out_shape=out_shape,
            in_specs=[vmem_spec] * (1 + 2 * n),
            out_specs=vmem_spec,
            compiler_params=pltpu.CompilerParams(vmem_limit_bytes=vmem_limit),
            cost_estimate=cost,
        )(xp, *ws, *bs)
    else:
        # Tile the batch ("parallel" -> megacore sharding). Weights/biases have
        # constant block indices and are single-buffered (Buffered(1)): they
        # stay VMEM-resident without the 2x footprint of default pipelining.
        # If profiling shows the x DMA exposed (tiny hidden dims), raise the
        # x spec to pipeline_mode=pl.Buffered(3).
        x_spec = pl.BlockSpec((blk, in_f), lambda i: (i, 0))
        w_specs = [pl.BlockSpec(tuple(w.shape), lambda i: (0, 0),
                                pipeline_mode=pl.Buffered(buffer_count=1))
                   for w in ws]
        b_specs = [pl.BlockSpec(tuple(b.shape), lambda i: (0, 0),
                                pipeline_mode=pl.Buffered(buffer_count=1))
                   for b in bs]
        out = pl.pallas_call(
            kernel,
            out_shape=out_shape,
            grid=(n_tiles,),
            in_specs=[x_spec] + w_specs + b_specs,
            out_specs=pl.BlockSpec((blk, out_pads[-1]), lambda i: (i, 0)),
            compiler_params=pltpu.CompilerParams(
                dimension_semantics=("parallel",),
                vmem_limit_bytes=vmem_limit),
            cost_estimate=cost,
        )(xp, *ws, *bs)

    # Keep the kernel output lane-dense (full 128-multiple last dim, unmasked
    # vst); the cheap slice back to the true shape happens here.
    return out[:batch, :dims[-1]]


def init_mlp_params(key, input_size, output_sizes, dtype=jnp.float32):
    """Deterministic parameter init (PyTorch-Linear-style uniform bounds)."""
    params = []
    in_f = input_size
    for out_f in output_sizes:
        key, kw, kb = jax.random.split(key, 3)
        bound = 1.0 / (in_f ** 0.5)
        w = jax.random.uniform(kw, (in_f, out_f), dtype, -bound, bound)
        b = jax.random.uniform(kb, (out_f,), dtype, -bound, bound)
        params.append((w, b))
        in_f = out_f
    return params


def mlp_reference(x, params, output_sizes):
    """Pure-JAX reference with the same bf16-operand / f32-accumulate math."""
    h = x
    for (w, b), size in zip(params, output_sizes):
        y = jnp.dot(h.astype(jnp.bfloat16), w.astype(jnp.bfloat16),
                    preferred_element_type=jnp.float32)
        y = y + b.astype(jnp.float32)
        if int(size) != 1:
            y = jnp.maximum(y, 0.0)
        h = y
    return h


if __name__ == "__main__":
    key = jax.random.PRNGKey(0)

    # --- Test 1: small batch -> no-grid, whole-arrays-in-VMEM path ---------
    batch, input_size, output_sizes = 8, 32, [64, 32, 16]
    key, kx = jax.random.split(key)
    x = jax.random.normal(kx, (batch, input_size), jnp.float32)
    key, kp = jax.random.split(key)
    params = init_mlp_params(kp, input_size, output_sizes)

    out = jax.block_until_ready(mlp_pallas_forward(x, params, output_sizes))
    ref = mlp_reference(x, params, output_sizes)
    assert out.shape == (batch, output_sizes[-1])
    assert jnp.allclose(out, ref, atol=1e-4, rtol=1e-3), (
        "max abs err = %f" % float(jnp.max(jnp.abs(out - ref))))

    # --- Test 2: larger batch -> tiled 'parallel' grid path (2 even tiles,
    #             single-buffered resident weights); final size==1 exercises
    #             the VPU/XLU scalar-head path and "no activation after the
    #             size-1 layer". ---------------------------------------------
    batch2, output_sizes2 = 384, [64, 32, 1]
    key, kx2 = jax.random.split(key)
    x2 = jax.random.normal(kx2, (batch2, input_size), jnp.float32)
    key, kp2 = jax.random.split(key)
    params2 = init_mlp_params(kp2, input_size, output_sizes2)

    out2 = jax.block_until_ready(
        mlp_pallas_forward(x2, params2, output_sizes2, block_batch=512))
    ref2 = mlp_reference(x2, params2, output_sizes2)
    assert out2.shape == (batch2, 1)
    assert jnp.allclose(out2, ref2, atol=1e-4, rtol=1e-3), (
        "max abs err = %f" % float(jnp.max(jnp.abs(out2 - ref2))))

    print("KERNEL_OK")
</pallas_src>

<mosaic_0001>
module attributes {stable_mosaic.version = 11 : i64} {
  func.func @_fused_mlp_kernel(%arg0: memref<8x32xf32, #tpu.memory_space<vmem>>, %arg1: memref<32x128xbf16, #tpu.memory_space<vmem>>, %arg2: memref<128x128xbf16, #tpu.memory_space<vmem>>, %arg3: memref<128x128xbf16, #tpu.memory_space<vmem>>, %arg4: memref<1x128xf32, #tpu.memory_space<vmem>>, %arg5: memref<1x128xf32, #tpu.memory_space<vmem>>, %arg6: memref<1x128xf32, #tpu.memory_space<vmem>>, %arg7: memref<8x128xf32, #tpu.memory_space<vmem>>) attributes {dimension_semantics = [], scalar_prefetch = 0 : i64, scratch_operands = 0 : i64, tpu.core_type = #tpu.core_type<tc>} {
    %c0 = arith.constant 0 : index
    %c0_0 = arith.constant 0 : index
    %0 = vector.load %arg0[%c0, %c0_0] : memref<8x32xf32, #tpu.memory_space<vmem>>, vector<8x32xf32>
    %1 = arith.truncf %0 : vector<8x32xf32> to vector<8x32xbf16>
    %c0_1 = arith.constant 0 : index
    %c0_2 = arith.constant 0 : index
    %2 = vector.load %arg1[%c0_1, %c0_2] : memref<32x128xbf16, #tpu.memory_space<vmem>>, vector<32x128xbf16>
    %cst = arith.constant dense<0.000000e+00> : vector<8x128xf32>
    %3 = tpu.matmul %1, %2, %cst {dimension_numbers = #tpu.dot_dimension_numbers<[1], [0], [0], [1], [0, 0, 1, 1], [], []>} : vector<8x32xbf16>, vector<32x128xbf16>, vector<8x128xf32> -> vector<8x128xf32>
    %c0_3 = arith.constant 0 : index
    %c0_4 = arith.constant 0 : index
    %4 = vector.load %arg4[%c0_3, %c0_4] : memref<1x128xf32, #tpu.memory_space<vmem>>, vector<1x128xf32>
    %5 = vector.broadcast %4 : vector<1x128xf32> to vector<8x128xf32>
    %6 = arith.addf %3, %5 : vector<8x128xf32>
    %cst_5 = arith.constant 0.000000e+00 : f32
    %7 = vector.broadcast %cst_5 : f32 to vector<8x128xf32>
    %8 = arith.maximumf %6, %7 : vector<8x128xf32>
    %9 = arith.truncf %8 : vector<8x128xf32> to vector<8x128xbf16>
    %c0_6 = arith.constant 0 : index
    %c0_7 = arith.constant 0 : index
    %10 = vector.load %arg2[%c0_6, %c0_7] : memref<128x128xbf16, #tpu.memory_space<vmem>>, vector<128x128xbf16>
    %cst_8 = arith.constant dense<0.000000e+00> : vector<8x128xf32>
    %11 = tpu.matmul %9, %10, %cst_8 {dimension_numbers = #tpu.dot_dimension_numbers<[1], [0], [0], [1], [0, 0, 1, 1], [], []>} : vector<8x128xbf16>, vector<128x128xbf16>, vector<8x128xf32> -> vector<8x128xf32>
    %c0_9 = arith.constant 0 : index
    %c0_10 = arith.constant 0 : index
    %12 = vector.load %arg5[%c0_9, %c0_10] : memref<1x128xf32, #tpu.memory_space<vmem>>, vector<1x128xf32>
    %13 = vector.broadcast %12 : vector<1x128xf32> to vector<8x128xf32>
    %14 = arith.addf %11, %13 : vector<8x128xf32>
    %cst_11 = arith.constant 0.000000e+00 : f32
    %15 = vector.broadcast %cst_11 : f32 to vector<8x128xf32>
    %16 = arith.maximumf %14, %15 : vector<8x128xf32>
    %17 = arith.truncf %16 : vector<8x128xf32> to vector<8x128xbf16>
    %c0_12 = arith.constant 0 : index
    %c0_13 = arith.constant 0 : index
    %18 = vector.load %arg3[%c0_12, %c0_13] : memref<128x128xbf16, #tpu.memory_space<vmem>>, vector<128x128xbf16>
    %cst_14 = arith.constant dense<0.000000e+00> : vector<8x128xf32>
    %19 = tpu.matmul %17, %18, %cst_14 {dimension_numbers = #tpu.dot_dimension_numbers<[1], [0], [0], [1], [0, 0, 1, 1], [], []>} : vector<8x128xbf16>, vector<128x128xbf16>, vector<8x128xf32> -> vector<8x128xf32>
    %c0_15 = arith.constant 0 : index
    %c0_16 = arith.constant 0 : index
    %20 = vector.load %arg6[%c0_15, %c0_16] : memref<1x128xf32, #tpu.memory_space<vmem>>, vector<1x128xf32>
    %21 = vector.broadcast %20 : vector<1x128xf32> to vector<8x128xf32>
    %22 = arith.addf %19, %21 : vector<8x128xf32>
    %cst_17 = arith.constant 0.000000e+00 : f32
    %23 = vector.broadcast %cst_17 : f32 to vector<8x128xf32>
    %24 = arith.maximumf %22, %23 : vector<8x128xf32>
    %c0_18 = arith.constant 0 : index
    %c0_19 = arith.constant 0 : index
    %25 = vector.load %arg7[%c0_18, %c0_19] : memref<8x128xf32, #tpu.memory_space<vmem>>, vector<8x128xf32>
    tpu.vector_store %arg7[%c0_18, %c0_19], %24 {strides = array<i32>} : memref<8x128xf32, #tpu.memory_space<vmem>>, vector<8x128xf32>,
    return
  }
}

</mosaic_0001>

<llo_original>
// kernel: tpu_custom_call.1
$region0: #{tpu_custom_call.1}
  #allocation0 [shape = 'u32[]', space=smem, size = 0x4, offset = 0x4, fixed_abs, tag = 'smem constant byte address 0x4 - core index']
  #allocation1 [shape = 'u32[144,128]{1,0:T(1,128)}', space=vmem, size = 0x12000, scoped, tag = 'internal scratch']
  %s0 = inlined_call_operand.hbm [shape: f32[8,32], index: 0, kind: input, shape index: {}]
  %s1 = inlined_call_operand.hbm [shape: bf16[32,128], index: 1, kind: input, shape index: {}]
  %s2 = inlined_call_operand.hbm [shape: bf16[128,128], index: 2, kind: input, shape index: {}]
  %s3 = inlined_call_operand.hbm [shape: bf16[128,128], index: 3, kind: input, shape index: {}]
  %s4 = inlined_call_operand.vmem [shape: f32[1,128], index: 4, kind: input, shape index: {}]
  %s5 = inlined_call_operand.vmem [shape: f32[1,128], index: 5, kind: input, shape index: {}]
  %s6 = inlined_call_operand.vmem [shape: f32[1,128], index: 6, kind: input, shape index: {}]
  %s7 = inlined_call_operand.hbm [shape: f32[8,128], index: 7, kind: output, shape index: {}]
  %s8 = sld [smem:[#allocation0]]
  $region54: #{tpu_custom_call.1} parent=0
    _
  %s10 = ssub.s32 1, %s8
  %s11 = scalar_select 0, %s10, %s8
  $region1: #{tpu_custom_call.1} parent=0
    #allocation2 [shape = 'u8[4096]{0}', space=vmem, size = 0x1000, scoped, tag = 'input window, operand 0, single buffered']
    #allocation3 [shape = 's32[1]{0}', space=sflag, size = 0x4, scoped, tag = 'scoped memory for tpu_custom_call.1']
    #allocation4 [shape = 's32[1]{0}', space=sflag, size = 0x4, scoped, tag = 'scoped memory for tpu_custom_call.1']
    #allocation5 [shape = 'u8[8192]{0}', space=vmem, size = 0x2000, scoped, tag = 'input window, operand 1, single buffered']
    #allocation6 [shape = 's32[1]{0}', space=sflag, size = 0x4, scoped, tag = 'scoped memory for tpu_custom_call.1']
    #allocation7 [shape = 'u8[32768]{0}', space=vmem, size = 0x8000, scoped, tag = 'input window, operand 2, single buffered']
    #allocation8 [shape = 'u8[32768]{0}', space=vmem, size = 0x8000, scoped, tag = 'input window, operand 3, single buffered']
    #allocation9 [shape = 's32[1]{0}', space=sflag, size = 0x4, scoped, tag = 'scoped memory for tpu_custom_call.1']
    #allocation10 [shape = 'u8[4096]{0}', space=vmem, size = 0x1000, scoped, tag = 'output window, operand 0, single buffered']
    %12 = vsyncpa [#allocation3], 0
    %13 = vsyncpa [#allocation6], 0
    %14 = vsyncpa [#allocation9], 0
    %15 = vsyncpa [#allocation4], 0
    // Predicated region
    $region2: #{tpu_custom_call.1} parent=1 // pred_check
      _
    $region3: #{tpu_custom_call.1} parent=1 // pred_check_branch
      %17 = sbr.rel (0) target = $region5
    $region4: #{tpu_custom_call.1} parent=1 // pred_region
      %s19 = ssub.s32 128, 128
      %20 = vsyncadd [#allocation3], %s19
      %s22 = sshll.u32 [#allocation2], 4
      %s23 = int_to_ptr.vmem [resolvable:$true] %s22
      %25 = dma.hbm_to_vmem [thread:$0]  %s0, 128, %s23, [#allocation3]
    $region5: #{tpu_custom_call.1} parent=1 // pred_fallthru
      _
    // Predicated region
    $region6: #{tpu_custom_call.1} parent=1 // pred_check
      _
    $region7: #{tpu_custom_call.1} parent=1 // pred_check_branch
      %27 = sbr.rel (0) target = $region9
    $region8: #{tpu_custom_call.1} parent=1 // pred_region
      %s29 = ssub.s32 256, 256
      %30 = vsyncadd [#allocation6], %s29
      %s31 = sshll.u32 [#allocation5], 4
      %s32 = int_to_ptr.vmem [resolvable:$true] %s31
      %37 = dma.hbm_to_vmem [thread:$0]  %s1, 256, %s32, [#allocation6], 64, 64, 4
    $region9: #{tpu_custom_call.1} parent=1 // pred_fallthru
      _
    // Predicated region
    $region10: #{tpu_custom_call.1} parent=1 // pred_check
      _
    $region11: #{tpu_custom_call.1} parent=1 // pred_check_branch
      %39 = sbr.rel (0) target = $region13
    $region12: #{tpu_custom_call.1} parent=1 // pred_region
      %s41 = ssub.s32 1024, 1024
      %42 = vsyncadd [#allocation6], %s41
      %s43 = sshll.u32 [#allocation7], 4
      %s44 = int_to_ptr.vmem [resolvable:$true] %s43
      %49 = dma.hbm_to_vmem [thread:$0]  %s2, 1024, %s44, [#allocation6], 64, 64, 4
    $region13: #{tpu_custom_call.1} parent=1 // pred_fallthru
      _
    // Predicated region
    $region14: #{tpu_custom_call.1} parent=1 // pred_check
      _
    $region15: #{tpu_custom_call.1} parent=1 // pred_check_branch
      %51 = sbr.rel (0) target = $region17
    $region16: #{tpu_custom_call.1} parent=1 // pred_region
      %s53 = ssub.s32 1024, 1024
      %54 = vsyncadd [#allocation9], %s53
      %s55 = sshll.u32 [#allocation8], 4
      %s56 = int_to_ptr.vmem [resolvable:$true] %s55
      %61 = dma.hbm_to_vmem [thread:$0]  %s3, 1024, %s56, [#allocation9], 64, 64, 4
    $region17: #{tpu_custom_call.1} parent=1 // pred_fallthru
      _
    // Predicated region
    $region18: #{tpu_custom_call.1} parent=1 // pred_check
      _
    $region19: #{tpu_custom_call.1} parent=1 // pred_check_branch
      %63 = sbr.rel (0) target = $region21
    $region20: #{tpu_custom_call.1} parent=1 // pred_region
      _
    $region21: #{tpu_custom_call.1} parent=1 // pred_fallthru
      _
    // Predicated region
    $region22: #{tpu_custom_call.1} parent=1 // pred_check
      _
    $region23: #{tpu_custom_call.1} parent=1 // pred_check_branch
      %65 = sbr.rel (0) target = $region25
    $region24: #{tpu_custom_call.1} parent=1 // pred_region
      _
    $region25: #{tpu_custom_call.1} parent=1 // pred_fallthru
      _
    // Predicated region
    $region26: #{tpu_custom_call.1} parent=1 // pred_check
      _
    $region27: #{tpu_custom_call.1} parent=1 // pred_check_branch
      %67 = sbr.rel (0) target = $region29
    $region28: #{tpu_custom_call.1} parent=1 // pred_region
      _
    $region29: #{tpu_custom_call.1} parent=1 // pred_fallthru
      _
    // Predicated region
    $region30: #{tpu_custom_call.1} parent=1 // pred_check
      _
    $region31: #{tpu_custom_call.1} parent=1 // pred_check_branch
      %69 = sbr.rel (0) target = $region33
    $region32: #{tpu_custom_call.1} parent=1 // pred_region
      %70 = dma.done [#allocation3], 128
    $region33: #{tpu_custom_call.1} parent=1 // pred_fallthru
      _
    // Predicated region
    $region34: #{tpu_custom_call.1} parent=1 // pred_check
      _
    $region35: #{tpu_custom_call.1} parent=1 // pred_check_branch
      %72 = sbr.rel (0) target = $region37
    $region36: #{tpu_custom_call.1} parent=1 // pred_region
      %73 = dma.done [#allocation6], 256
    $region37: #{tpu_custom_call.1} parent=1 // pred_fallthru
      _
    // Predicated region
    $region38: #{tpu_custom_call.1} parent=1 // pred_check
      _
    $region39: #{tpu_custom_call.1} parent=1 // pred_check_branch
      %75 = sbr.rel (0) target = $region41
    $region40: #{tpu_custom_call.1} parent=1 // pred_region
      %76 = dma.done [#allocation6], 1024
    $region41: #{tpu_custom_call.1} parent=1 // pred_fallthru
      _
    // Predicated region
    $region42: #{tpu_custom_call.1} parent=1 // pred_check
      _
    $region43: #{tpu_custom_call.1} parent=1 // pred_check_branch
      %78 = sbr.rel (0) target = $region45
    $region44: #{tpu_custom_call.1} parent=1 // pred_region
      %79 = dma.done [#allocation9], 1024
    $region45: #{tpu_custom_call.1} parent=1 // pred_fallthru
      _
    %v81 = vld [vmem:[#allocation2] sm:$0xff]
    %v82 = vpack.c.bf16 %v81, %v81
    %v83 = vld [vmem:[#allocation5] sm:$0xf]
    %v84 = vld [vmem:[#allocation5 + $0x4] sm:$0xf]
    %v85 = vld [vmem:[#allocation5 + $0x8] sm:$0xf]
    %v86 = vld [vmem:[#allocation5 + $0xc] sm:$0xf]
    %v87 = vld [vmem:[%s4] sm:$0x1]
    %v89 = vlaneseq
    %v90 = vshrl.u32 %v89, 7
    %v91 = vsub.s32 0, %v90
    %v92 = vrot.slane %v87, %v91
    %v98 = vunpack.c.l.b16 %v83
    %v99 = vunpack.c.l.b16 %v84
    %v100 = vunpack.c.l.b16 %v85
    %v101 = vunpack.c.l.b16 %v86
    %v102 = vpack.c.b16 %v99, %v98
    %v103 = vpack.c.b16 %v101, %v100
    %vm106 = vcmask 261120
    %v108 = vsel %vm106, %v82, 0
    %110 = vmatprep.subr.bf16.mxu0 0
    %111 = vmatpush1.bf16.msra.mxu0 0
    %112 = vmatprep.subr.bf16.mxu0 0
    %113 = vmatpush1.bf16.msra.mxu0 0
    %114 = vmatprep.subr.bf16.mxu0 0
    %115 = vmatpush1.bf16.msra.mxu0 0
    %116 = vmatprep.subr.bf16.mxu0 0
    %117 = vmatpush1.bf16.msra.mxu0 0
    %118 = vmatprep.subr.bf16.mxu0 0
    %119 = vmatpush1.bf16.msra.mxu0 0
    %120 = vmatprep.subr.bf16.mxu0 0
    %121 = vmatpush1.bf16.msra.mxu0 0
    %122 = vmatprep.subr.bf16.mxu0 0
    %123 = vmatpush1.bf16.msra.mxu0 %v103
    %124 = vmatprep.subr.bf16.mxu0 0
    %125 = vmatpush1.bf16.msra.mxu0 %v102
    %126 = vmatprep.subr.bf16.mxu0 0
    %127 = vmatpush2.bf16.msra.mxu0 0
    %128 = vmatprep.subr.bf16.mxu0 0
    %129 = vmatpush2.bf16.msra.mxu0 0
    %130 = vmatprep.subr.bf16.mxu0 0
    %131 = vmatpush2.bf16.msra.mxu0 0
    %132 = vmatprep.subr.bf16.mxu0 0
    %133 = vmatpush2.bf16.msra.mxu0 0
    %134 = vmatprep.subr.bf16.mxu0 0
    %135 = vmatpush2.bf16.msra.mxu0 0
    %136 = vmatprep.subr.bf16.mxu0 0
    %137 = vmatpush2.bf16.msra.mxu0 0
    %138 = vmatprep.subr.bf16.mxu0 0
    %139 = vmatpush2.bf16.msra.mxu0 0
    %140 = vmatprep.subr.bf16.mxu0 0
    %141 = vmatpush2.bf16.msra.mxu0 0
    %142 = vmatprep.mubr.bf16.mxu0 0
    %143 = vmatmul.mubr.bf16.gmra.mxu0 %v108
    %v144 = vpop.f32.mrf.mxu0
    %v145 = vadd.f32 %v92, %v144
    %v146 = vpop.f32.mrf.mxu0
    %v147 = vpop.f32.mrf.mxu0
    %v148 = vpop.f32.mrf.mxu0
    %149 = vdwg.mxu0
    %v150 = vmax.f32 %v145, 0.0
    %v151 = vpack.c.bf16 %v150, %v150
    %v152 = vld [vmem:[#allocation7] sm:$0xf]
    %v153 = vld [vmem:[#allocation7 + $0x4] sm:$0xf]
    %v154 = vld [vmem:[#allocation7 + $0x8] sm:$0xf]
    %v155 = vld [vmem:[#allocation7 + $0xc] sm:$0xf]
    %v156 = vld [vmem:[#allocation7 + $0x10] sm:$0xf]
    %v157 = vld [vmem:[#allocation7 + $0x14] sm:$0xf]
    %v158 = vld [vmem:[#allocation7 + $0x18] sm:$0xf]
    %v159 = vld [vmem:[#allocation7 + $0x1c] sm:$0xf]
    %v160 = vld [vmem:[#allocation7 + $0x20] sm:$0xf]
    %v161 = vld [vmem:[#allocation7 + $0x24] sm:$0xf]
    %v162 = vld [vmem:[#allocation7 + $0x28] sm:$0xf]
    %v163 = vld [vmem:[#allocation7 + $0x2c] sm:$0xf]
    %v164 = vld [vmem:[#allocation7 + $0x30] sm:$0xf]
    %v165 = vld [vmem:[#allocation7 + $0x34] sm:$0xf]
    %v166 = vld [vmem:[#allocation7 + $0x38] sm:$0xf]
    %v167 = vld [vmem:[#allocation7 + $0x3c] sm:$0xf]
    %v168 = vld [vmem:[%s5] sm:$0x1]
    %v170 = vlaneseq
    %v171 = vshrl.u32 %v170, 7
    %v172 = vsub.s32 0, %v171
    %v173 = vrot.slane %v168, %v172
    %v191 = vunpack.c.l.b16 %v152
    %v192 = vunpack.c.l.b16 %v153
    %v193 = vunpack.c.l.b16 %v154
    %v194 = vunpack.c.l.b16 %v155
    %v195 = vunpack.c.l.b16 %v156
    %v196 = vunpack.c.l.b16 %v157
    %v197 = vunpack.c.l.b16 %v158
    %v198 = vunpack.c.l.b16 %v159
    %v199 = vunpack.c.l.b16 %v160
    %v200 = vunpack.c.l.b16 %v161
    %v201 = vunpack.c.l.b16 %v162
    %v202 = vunpack.c.l.b16 %v163
    %v203 = vunpack.c.l.b16 %v164
    %v204 = vunpack.c.l.b16 %v165
    %v205 = vunpack.c.l.b16 %v166
    %v206 = vunpack.c.l.b16 %v167
    %v207 = vpack.c.b16 %v192, %v191
    %v208 = vpack.c.b16 %v194, %v193
    %v209 = vpack.c.b16 %v196, %v195
    %v210 = vpack.c.b16 %v198, %v197
    %v211 = vpack.c.b16 %v200, %v199
    %v212 = vpack.c.b16 %v202, %v201
    %v213 = vpack.c.b16 %v204, %v203
    %v214 = vpack.c.b16 %v206, %v205
    %223 = vmatprep.subr.bf16.mxu0 0
    %224 = vmatpush1.bf16.msra.mxu0 %v214
    %225 = vmatprep.subr.bf16.mxu0 0
    %226 = vmatpush1.bf16.msra.mxu0 %v213
    %227 = vmatprep.subr.bf16.mxu0 0
    %228 = vmatpush1.bf16.msra.mxu0 %v212
    %229 = vmatprep.subr.bf16.mxu0 0
    %230 = vmatpush1.bf16.msra.mxu0 %v211
    %231 = vmatprep.subr.bf16.mxu0 0
    %232 = vmatpush1.bf16.msra.mxu0 %v210
    %233 = vmatprep.subr.bf16.mxu0 0
    %234 = vmatpush1.bf16.msra.mxu0 %v209
    %235 = vmatprep.subr.bf16.mxu0 0
    %236 = vmatpush1.bf16.msra.mxu0 %v208
    %237 = vmatprep.subr.bf16.mxu0 0
    %238 = vmatpush1.bf16.msra.mxu0 %v207
    %239 = vmatprep.subr.bf16.mxu0 0
    %240 = vmatpush2.bf16.msra.mxu0 0
    %241 = vmatprep.subr.bf16.mxu0 0
    %242 = vmatpush2.bf16.msra.mxu0 0
    %243 = vmatprep.subr.bf16.mxu0 0
    %244 = vmatpush2.bf16.msra.mxu0 0
    %245 = vmatprep.subr.bf16.mxu0 0
    %246 = vmatpush2.bf16.msra.mxu0 0
    %247 = vmatprep.subr.bf16.mxu0 0
    %248 = vmatpush2.bf16.msra.mxu0 0
    %249 = vmatprep.subr.bf16.mxu0 0
    %250 = vmatpush2.bf16.msra.mxu0 0
    %251 = vmatprep.subr.bf16.mxu0 0
    %252 = vmatpush2.bf16.msra.mxu0 0
    %253 = vmatprep.subr.bf16.mxu0 0
    %254 = vmatpush2.bf16.msra.mxu0 0
    %255 = vmatprep.mubr.bf16.mxu0 0
    %256 = vmatmul.mubr.bf16.gmra.mxu0 %v151
    %v257 = vpop.f32.mrf.mxu0
    %v258 = vadd.f32 %v173, %v257
    %v259 = vpop.f32.mrf.mxu0
    %v260 = vpop.f32.mrf.mxu0
    %v261 = vpop.f32.mrf.mxu0
    %262 = vdwg.mxu0
    %v263 = vmax.f32 %v258, 0.0
    %v264 = vpack.c.bf16 %v263, %v263
    %v265 = vld [vmem:[#allocation8] sm:$0xf]
    %v266 = vld [vmem:[#allocation8 + $0x4] sm:$0xf]
    %v267 = vld [vmem:[#allocation8 + $0x8] sm:$0xf]
    %v268 = vld [vmem:[#allocation8 + $0xc] sm:$0xf]
    %v269 = vld [vmem:[#allocation8 + $0x10] sm:$0xf]
    %v270 = vld [vmem:[#allocation8 + $0x14] sm:$0xf]
    %v271 = vld [vmem:[#allocation8 + $0x18] sm:$0xf]
    %v272 = vld [vmem:[#allocation8 + $0x1c] sm:$0xf]
    %v273 = vld [vmem:[#allocation8 + $0x20] sm:$0xf]
    %v274 = vld [vmem:[#allocation8 + $0x24] sm:$0xf]
    %v275 = vld [vmem:[#allocation8 + $0x28] sm:$0xf]
    %v276 = vld [vmem:[#allocation8 + $0x2c] sm:$0xf]
    %v277 = vld [vmem:[#allocation8 + $0x30] sm:$0xf]
    %v278 = vld [vmem:[#allocation8 + $0x34] sm:$0xf]
    %v279 = vld [vmem:[#allocation8 + $0x38] sm:$0xf]
    %v280 = vld [vmem:[#allocation8 + $0x3c] sm:$0xf]
    %v281 = vld [vmem:[%s6] sm:$0x1]
    %v283 = vlaneseq
    %v284 = vshrl.u32 %v283, 7
    %v285 = vsub.s32 0, %v284
    %v286 = vrot.slane %v281, %v285
    %v304 = vunpack.c.l.b16 %v265
    %v305 = vunpack.c.l.b16 %v266
    %v306 = vunpack.c.l.b16 %v267
    %v307 = vunpack.c.l.b16 %v268
    %v308 = vunpack.c.l.b16 %v269
    %v309 = vunpack.c.l.b16 %v270
    %v310 = vunpack.c.l.b16 %v271
    %v311 = vunpack.c.l.b16 %v272
    %v312 = vunpack.c.l.b16 %v273
    %v313 = vunpack.c.l.b16 %v274
    %v314 = vunpack.c.l.b16 %v275
    %v315 = vunpack.c.l.b16 %v276
    %v316 = vunpack.c.l.b16 %v277
    %v317 = vunpack.c.l.b16 %v278
    %v318 = vunpack.c.l.b16 %v279
    %v319 = vunpack.c.l.b16 %v280
    %v320 = vpack.c.b16 %v305, %v304
    %v321 = vpack.c.b16 %v307, %v306
    %v322 = vpack.c.b16 %v309, %v308
    %v323 = vpack.c.b16 %v311, %v310
    %v324 = vpack.c.b16 %v313, %v312
    %v325 = vpack.c.b16 %v315, %v314
    %v326 = vpack.c.b16 %v317, %v316
    %v327 = vpack.c.b16 %v319, %v318
    %336 = vmatprep.subr.bf16.mxu0 0
    %337 = vmatpush1.bf16.msra.mxu0 %v327
    %338 = vmatprep.subr.bf16.mxu0 0
    %339 = vmatpush1.bf16.msra.mxu0 %v326
    %340 = vmatprep.subr.bf16.mxu0 0
    %341 = vmatpush1.bf16.msra.mxu0 %v325
    %342 = vmatprep.subr.bf16.mxu0 0
    %343 = vmatpush1.bf16.msra.mxu0 %v324
    %344 = vmatprep.subr.bf16.mxu0 0
    %345 = vmatpush1.bf16.msra.mxu0 %v323
    %346 = vmatprep.subr.bf16.mxu0 0
    %347 = vmatpush1.bf16.msra.mxu0 %v322
    %348 = vmatprep.subr.bf16.mxu0 0
    %349 = vmatpush1.bf16.msra.mxu0 %v321
    %350 = vmatprep.subr.bf16.mxu0 0
    %351 = vmatpush1.bf16.msra.mxu0 %v320
    %352 = vmatprep.subr.bf16.mxu0 0
    %353 = vmatpush2.bf16.msra.mxu0 0
    %354 = vmatprep.subr.bf16.mxu0 0
    %355 = vmatpush2.bf16.msra.mxu0 0
    %356 = vmatprep.subr.bf16.mxu0 0
    %357 = vmatpush2.bf16.msra.mxu0 0
    %358 = vmatprep.subr.bf16.mxu0 0
    %359 = vmatpush2.bf16.msra.mxu0 0
    %360 = vmatprep.subr.bf16.mxu0 0
    %361 = vmatpush2.bf16.msra.mxu0 0
    %362 = vmatprep.subr.bf16.mxu0 0
    %363 = vmatpush2.bf16.msra.mxu0 0
    %364 = vmatprep.subr.bf16.mxu0 0
    %365 = vmatpush2.bf16.msra.mxu0 0
    %366 = vmatprep.subr.bf16.mxu0 0
    %367 = vmatpush2.bf16.msra.mxu0 0
    %368 = vmatprep.mubr.bf16.mxu0 0
    %369 = vmatmul.mubr.bf16.gmra.mxu0 %v264
    %v370 = vpop.f32.mrf.mxu0
    %v371 = vadd.f32 %v286, %v370
    %v372 = vpop.f32.mrf.mxu0
    %v373 = vpop.f32.mrf.mxu0
    %v374 = vpop.f32.mrf.mxu0
    %375 = vdwg.mxu0
    %v376 = vmax.f32 %v371, 0.0
    %377 = vst [vmem:[#allocation10] sm:$0xff] %v376
    // Predicated region
    $region46: #{tpu_custom_call.1} parent=1 // pred_check
      _
    $region47: #{tpu_custom_call.1} parent=1 // pred_check_branch
      %379 = sbr.rel (0) target = $region49
    $region48: #{tpu_custom_call.1} parent=1 // pred_region
      %s381 = ssub.s32 128, 128
      %382 = vsyncadd [#allocation4], %s381
      %s384 = sshll.u32 [#allocation10], 4
      %s385 = int_to_ptr.vmem [resolvable:$true] %s384
      %387 = dma.vmem_to_hbm [thread:$0]  %s385, 128, %s7, [#allocation4]
    $region49: #{tpu_custom_call.1} parent=1 // pred_fallthru
      _
    // Predicated region
    $region50: #{tpu_custom_call.1} parent=1 // pred_check
      _
    $region51: #{tpu_custom_call.1} parent=1 // pred_check_branch
      %389 = sbr.rel (0) target = $region53
    $region52: #{tpu_custom_call.1} parent=1 // pred_region
      %390 = dma.done [#allocation4], 128
    $region53: #{tpu_custom_call.1} parent=1 // pred_fallthru
      _
    %391 = vsyncpa [#allocation3], 1
    %392 = vsyncpa [#allocation6], 1
    %393 = vsyncpa [#allocation9], 1
    %394 = vsyncpa [#allocation4], 1

</llo_original>
